<compile_context>
chip_gen: v6e
topology: v6e:2x2x1
jax: 0.10.0
libtpu: 0.0.40
codegen_flags: <defaults>
</compile_context>

<pallas_src>
import jax
import jax.numpy as jnp
from jax.experimental import pallas as pl
from jax.experimental.pallas import tpu as pltpu

B, C_IN, H, W = 2, 4, 16, 16      # NCHW input, batch=2, channels=4, spatial=16
C_MIX = 32                        # mixed_3b output channels (hooked feature maps)
NUM_CLASSES = 10
HW = H * W                        # 256 pixels per batch element (lane axis)


def _model_kernel(x_ref, wct_ref, bc_ref, wf_ref, bf_ref, feat_ref, logits_ref):
    # x_ref:      [C_IN, HW]            one batch element, channels on sublanes,
    #                                   pixels on the 256-wide lane axis
    # wct_ref:    [C_MIX, C_IN]         transposed 1x1 conv weight
    # bc_ref:     [C_MIX, 1]            conv bias (column vector)
    # wf_ref:     [C_MIX, NUM_CLASSES]  classifier weight
    # bf_ref:     [1, NUM_CLASSES]      classifier bias
    # feat_ref:   [C_MIX, HW]           hooked mixed_3b feature maps (lane-dense, unpadded)
    # logits_ref: [1, NUM_CLASSES]      per-batch logits
    x = x_ref[...]                              # [C_IN, HW]
    wct = wct_ref[...]                          # [C_MIX, C_IN]

    # "mixed_3b" 1x1 conv as C_IN=4 VPU broadcast MACs (a K=4 MXU matmul would
    # use ~3% of the contraction width and still pay full push/pop latency).
    feat = jnp.broadcast_to(bc_ref[...], (C_MIX, HW))        # lane-broadcast bias
    for k in range(C_IN):                                    # static unroll, C_IN = 4
        wk = jnp.broadcast_to(wct[:, k:k + 1], (C_MIX, HW))  # lane broadcast
        xk = jnp.broadcast_to(x[k:k + 1, :], (C_MIX, HW))    # sublane broadcast
        feat = feat + wk * xk
    feat = jnp.maximum(feat, 0.0)
    feat_ref[...] = feat                        # forward-hook capture (unmasked 256-lane vst)

    # Global average pool: single in-tile lane reduction (XLU), no accumulation phases.
    pooled = jnp.sum(feat, axis=1, keepdims=True) * (1.0 / float(HW))   # [C_MIX, 1]

    # Tiny classifier head on VPU + sublane reduce instead of an M=1 MXU dot.
    logits_ref[...] = (jnp.sum(wf_ref[...] * pooled, axis=0, keepdims=True)
                       + bf_ref[...])


@jax.jit
def model_forward(x_nchw, wct, bc_col, wf, bf_row):
    # Channels-first layout is already what the kernel wants: free reshape, no transpose.
    x3d = x_nchw.reshape(B, C_IN, HW)

    feat_p, logits_p = pl.pallas_call(
        _model_kernel,
        out_shape=(
            jax.ShapeDtypeStruct((B, C_MIX, HW), jnp.float32),
            jax.ShapeDtypeStruct((B, 1, NUM_CLASSES), jnp.float32),
        ),
        grid=(B,),
        in_specs=[
            pl.BlockSpec((None, C_IN, HW), lambda b: (b, 0, 0)),
            pl.BlockSpec((C_MIX, C_IN), lambda b: (0, 0)),
            pl.BlockSpec((C_MIX, 1), lambda b: (0, 0)),
            pl.BlockSpec((C_MIX, NUM_CLASSES), lambda b: (0, 0)),
            pl.BlockSpec((1, NUM_CLASSES), lambda b: (0, 0)),
        ],
        out_specs=(
            pl.BlockSpec((None, C_MIX, HW), lambda b: (b, 0, 0)),
            pl.BlockSpec((None, 1, NUM_CLASSES), lambda b: (b, 0, 0)),
        ),
        compiler_params=pltpu.CompilerParams(
            dimension_semantics=("parallel",)),   # v7x: one batch element per TensorCore
    )(x3d, wct, bc_col, wf, bf_row)

    logits = logits_p.reshape(B, NUM_CLASSES)                 # free metadata reshape
    feature_maps = feat_p.reshape(B, C_MIX, H, W)             # already NCHW order: free reshape
    return logits, feature_maps


class ModelWrapper:
    """JAX/Pallas analogue of the torch ModelWrapper: forward returns the model
    output; mixed_3b activations are captured as `feature_maps` (forward hook)."""
    # TODO(synk): the backward hook (gradient capture) has no forward-pass Pallas equivalent.

    def __init__(self, params):
        wc, bc, wf, bf = params
        # Layout prep hoisted out of the per-call path (done once per model):
        self.wct = jnp.transpose(jnp.asarray(wc))             # [C_MIX, C_IN]
        self.bc_col = jnp.asarray(bc).reshape(C_MIX, 1)       # [C_MIX, 1]
        self.wf = jnp.asarray(wf)                             # [C_MIX, NUM_CLASSES]
        self.bf_row = jnp.asarray(bf).reshape(1, NUM_CLASSES) # [1, NUM_CLASSES]
        self.feature_maps = None
        self.gradients = None

    def forward(self, x):
        logits, feat = model_forward(x, self.wct, self.bc_col, self.wf, self.bf_row)
        self.feature_maps = feat
        return logits

    __call__ = forward


if __name__ == "__main__":
    key = jax.random.PRNGKey(0)
    kx, kwc, kbc, kwf, kbf = jax.random.split(key, 5)

    x = jax.random.normal(kx, (B, C_IN, H, W), dtype=jnp.float32)
    wc = jax.random.normal(kwc, (C_IN, C_MIX), dtype=jnp.float32) * 0.1
    bc = jax.random.normal(kbc, (1, C_MIX), dtype=jnp.float32) * 0.1
    wf = jax.random.normal(kwf, (C_MIX, NUM_CLASSES), dtype=jnp.float32) * 0.1
    bf = jax.random.normal(kbf, (1, NUM_CLASSES), dtype=jnp.float32) * 0.1

    wrapper = ModelWrapper((wc, bc, wf, bf))
    out = wrapper(x)
    jax.block_until_ready(out)

    assert out.shape == (B, NUM_CLASSES) and out.dtype == jnp.float32
    assert wrapper.feature_maps.shape == (B, C_MIX, H, W)

    # Pure-JAX reference check (same math: 1x1 conv + ReLU, avg pool, linear head).
    x_flat = x.reshape(B, C_IN, HW)
    feat_ref = jnp.maximum(
        jnp.einsum("bcp,cm->bmp", x_flat, wc,
                   preferred_element_type=jnp.float32)
        + bc.reshape(1, C_MIX, 1), 0.0)                       # [B, C_MIX, HW]
    pooled_ref = feat_ref.mean(axis=2)                        # [B, C_MIX]
    logits_ref = jnp.dot(pooled_ref, wf, preferred_element_type=jnp.float32) + bf
    feat_ref_nchw = feat_ref.reshape(B, C_MIX, H, W)

    assert jnp.allclose(out, logits_ref, atol=1e-2, rtol=1e-2)
    assert jnp.allclose(wrapper.feature_maps, feat_ref_nchw, atol=1e-2, rtol=1e-2)

    print("KERNEL_OK")
</pallas_src>

<mosaic_0001>
module attributes {stable_mosaic.version = 11 : i64} {
  func.func @_model_kernel(%arg0: i32, %arg1: memref<1x4x256xf32, #tpu.memory_space<vmem>>, %arg2: memref<32x4xf32, #tpu.memory_space<vmem>>, %arg3: memref<32x1xf32, #tpu.memory_space<vmem>>, %arg4: memref<32x10xf32, #tpu.memory_space<vmem>>, %arg5: memref<1x10xf32, #tpu.memory_space<vmem>>, %arg6: memref<1x32x256xf32, #tpu.memory_space<vmem>>, %arg7: memref<1x1x10xf32, #tpu.memory_space<vmem>>) attributes {dimension_semantics = [#tpu.dimension_semantics<parallel>], iteration_bounds = array<i64: 2>, scalar_prefetch = 0 : i64, scratch_operands = 0 : i64, tpu.core_type = #tpu.core_type<tc>, window_params = [{transform_indices = @transform_0, window_bounds = array<i64: 1, 4, 256>}, {pipeline_mode = #tpu.pipeline_mode<synchronous>, transform_indices = @transform_1, window_bounds = array<i64: 32, 4>}, {pipeline_mode = #tpu.pipeline_mode<synchronous>, transform_indices = @transform_2, window_bounds = array<i64: 32, 1>}, {pipeline_mode = #tpu.pipeline_mode<synchronous>, transform_indices = @transform_3, window_bounds = array<i64: 32, 10>}, {pipeline_mode = #tpu.pipeline_mode<synchronous>, transform_indices = @transform_4, window_bounds = array<i64: 1, 10>}, {transform_indices = @transform_5, window_bounds = array<i64: 1, 32, 256>}, {transform_indices = @transform_6, window_bounds = array<i64: 1, 1, 10>}]} {
    %c0 = arith.constant 0 : index
    %c0_0 = arith.constant 0 : index
    %c0_1 = arith.constant 0 : index
    %0 = vector.load %arg1[%c0, %c0_0, %c0_1] : memref<1x4x256xf32, #tpu.memory_space<vmem>>, vector<1x4x256xf32>
    %1 = vector.shape_cast %0 : vector<1x4x256xf32> to vector<4x256xf32>
    %c0_2 = arith.constant 0 : index
    %c0_3 = arith.constant 0 : index
    %2 = vector.load %arg2[%c0_2, %c0_3] : memref<32x4xf32, #tpu.memory_space<vmem>>, vector<32x4xf32>
    %c0_4 = arith.constant 0 : index
    %c0_5 = arith.constant 0 : index
    %3 = vector.load %arg3[%c0_4, %c0_5] : memref<32x1xf32, #tpu.memory_space<vmem>>, vector<32x1xf32>
    %4 = vector.shape_cast %3 : vector<32x1xf32> to vector<32x1xf32>
    %5 = vector.broadcast %4 : vector<32x1xf32> to vector<32x256xf32>
    %6 = vector.extract_strided_slice %2 {offsets = [0, 0], sizes = [32, 1], strides = [1, 1]} : vector<32x4xf32> to vector<32x1xf32>
    %7 = vector.shape_cast %6 : vector<32x1xf32> to vector<32x1xf32>
    %8 = vector.broadcast %7 : vector<32x1xf32> to vector<32x256xf32>
    %9 = vector.extract_strided_slice %1 {offsets = [0, 0], sizes = [1, 256], strides = [1, 1]} : vector<4x256xf32> to vector<1x256xf32>
    %10 = vector.shape_cast %9 : vector<1x256xf32> to vector<1x256xf32>
    %11 = vector.broadcast %10 : vector<1x256xf32> to vector<32x256xf32>
    %12 = arith.mulf %8, %11 : vector<32x256xf32>
    %13 = arith.addf %5, %12 : vector<32x256xf32>
    %14 = vector.extract_strided_slice %2 {offsets = [0, 1], sizes = [32, 1], strides = [1, 1]} : vector<32x4xf32> to vector<32x1xf32>
    %15 = vector.shape_cast %14 : vector<32x1xf32> to vector<32x1xf32>
    %16 = vector.broadcast %15 : vector<32x1xf32> to vector<32x256xf32>
    %17 = vector.extract_strided_slice %1 {offsets = [1, 0], sizes = [1, 256], strides = [1, 1]} : vector<4x256xf32> to vector<1x256xf32>
    %18 = vector.shape_cast %17 : vector<1x256xf32> to vector<1x256xf32>
    %19 = vector.broadcast %18 : vector<1x256xf32> to vector<32x256xf32>
    %20 = arith.mulf %16, %19 : vector<32x256xf32>
    %21 = arith.addf %13, %20 : vector<32x256xf32>
    %22 = vector.extract_strided_slice %2 {offsets = [0, 2], sizes = [32, 1], strides = [1, 1]} : vector<32x4xf32> to vector<32x1xf32>
    %23 = vector.shape_cast %22 : vector<32x1xf32> to vector<32x1xf32>
    %24 = vector.broadcast %23 : vector<32x1xf32> to vector<32x256xf32>
    %25 = vector.extract_strided_slice %1 {offsets = [2, 0], sizes = [1, 256], strides = [1, 1]} : vector<4x256xf32> to vector<1x256xf32>
    %26 = vector.shape_cast %25 : vector<1x256xf32> to vector<1x256xf32>
    %27 = vector.broadcast %26 : vector<1x256xf32> to vector<32x256xf32>
    %28 = arith.mulf %24, %27 : vector<32x256xf32>
    %29 = arith.addf %21, %28 : vector<32x256xf32>
    %30 = vector.extract_strided_slice %2 {offsets = [0, 3], sizes = [32, 1], strides = [1, 1]} : vector<32x4xf32> to vector<32x1xf32>
    %31 = vector.shape_cast %30 : vector<32x1xf32> to vector<32x1xf32>
    %32 = vector.broadcast %31 : vector<32x1xf32> to vector<32x256xf32>
    %33 = vector.extract_strided_slice %1 {offsets = [3, 0], sizes = [1, 256], strides = [1, 1]} : vector<4x256xf32> to vector<1x256xf32>
    %34 = vector.shape_cast %33 : vector<1x256xf32> to vector<1x256xf32>
    %35 = vector.broadcast %34 : vector<1x256xf32> to vector<32x256xf32>
    %36 = arith.mulf %32, %35 : vector<32x256xf32>
    %37 = arith.addf %29, %36 : vector<32x256xf32>
    %cst = arith.constant 0.000000e+00 : f32
    %38 = vector.broadcast %cst : f32 to vector<32x256xf32>
    %39 = arith.maximumf %37, %38 : vector<32x256xf32>
    %c0_6 = arith.constant 0 : index
    %c0_7 = arith.constant 0 : index
    %c0_8 = arith.constant 0 : index
    %40 = vector.load %arg6[%c0_6, %c0_7, %c0_8] : memref<1x32x256xf32, #tpu.memory_space<vmem>>, vector<1x32x256xf32>
    %41 = vector.shape_cast %40 : vector<1x32x256xf32> to vector<32x256xf32>
    %42 = vector.shape_cast %39 : vector<32x256xf32> to vector<1x32x256xf32>
    tpu.vector_store %arg6[%c0_6, %c0_7, %c0_8], %42 {strides = array<i32>} : memref<1x32x256xf32, #tpu.memory_space<vmem>>, vector<1x32x256xf32>,
    %cst_9 = arith.constant dense<0.000000e+00> : vector<32xf32>
    %43 = vector.multi_reduction <add>, %39, %cst_9 [1] : vector<32x256xf32> to vector<32xf32>
    %44 = vector.shape_cast %43 : vector<32xf32> to vector<32x1xf32>
    %cst_10 = arith.constant 3.906250e-03 : f32
    %45 = vector.broadcast %cst_10 : f32 to vector<32x1xf32>
    %46 = arith.mulf %44, %45 : vector<32x1xf32>
    %c0_11 = arith.constant 0 : index
    %c0_12 = arith.constant 0 : index
    %47 = vector.load %arg4[%c0_11, %c0_12] : memref<32x10xf32, #tpu.memory_space<vmem>>, vector<32x10xf32>
    %48 = vector.broadcast %46 : vector<32x1xf32> to vector<32x10xf32>
    %49 = arith.mulf %47, %48 : vector<32x10xf32>
    %cst_13 = arith.constant dense<0.000000e+00> : vector<10xf32>
    %50 = vector.multi_reduction <add>, %49, %cst_13 [0] : vector<32x10xf32> to vector<10xf32>
    %51 = vector.shape_cast %50 : vector<10xf32> to vector<1x10xf32>
    %c0_14 = arith.constant 0 : index
    %c0_15 = arith.constant 0 : index
    %52 = vector.load %arg5[%c0_14, %c0_15] : memref<1x10xf32, #tpu.memory_space<vmem>>, vector<1x10xf32>
    %53 = arith.addf %51, %52 : vector<1x10xf32>
    %c0_16 = arith.constant 0 : index
    %c0_17 = arith.constant 0 : index
    %c0_18 = arith.constant 0 : index
    %54 = vector.load %arg7[%c0_16, %c0_17, %c0_18] : memref<1x1x10xf32, #tpu.memory_space<vmem>>, vector<1x1x10xf32>
    %55 = vector.shape_cast %54 : vector<1x1x10xf32> to vector<1x10xf32>
    %56 = vector.shape_cast %53 : vector<1x10xf32> to vector<1x1x10xf32>
    tpu.vector_store %arg7[%c0_16, %c0_17, %c0_18], %56 {strides = array<i32>} : memref<1x1x10xf32, #tpu.memory_space<vmem>>, vector<1x1x10xf32>,
    return
  }
  func.func @transform_0(%arg0: i32) -> (i32, i32, i32) {
    %c0_i32 = arith.constant 0 : i32
    %c0_i32_0 = arith.constant 0 : i32
    %c0_i32_1 = arith.constant 0 : i32
    return %arg0, %c0_i32, %c0_i32_0 : i32, i32, i32
  }
  func.func @transform_1(%arg0: i32) -> (i32, i32) {
    %c0_i32 = arith.constant 0 : i32
    %c0_i32_0 = arith.constant 0 : i32
    %c0_i32_1 = arith.constant 0 : i32
    return %c0_i32, %c0_i32_0 : i32, i32
  }
  func.func @transform_2(%arg0: i32) -> (i32, i32) {
    %c0_i32 = arith.constant 0 : i32
    %c0_i32_0 = arith.constant 0 : i32
    %c0_i32_1 = arith.constant 0 : i32
    return %c0_i32, %c0_i32_0 : i32, i32
  }
  func.func @transform_3(%arg0: i32) -> (i32, i32) {
    %c0_i32 = arith.constant 0 : i32
    %c0_i32_0 = arith.constant 0 : i32
    %c0_i32_1 = arith.constant 0 : i32
    return %c0_i32, %c0_i32_0 : i32, i32
  }
  func.func @transform_4(%arg0: i32) -> (i32, i32) {
    %c0_i32 = arith.constant 0 : i32
    %c0_i32_0 = arith.constant 0 : i32
    %c0_i32_1 = arith.constant 0 : i32
    return %c0_i32, %c0_i32_0 : i32, i32
  }
  func.func @transform_5(%arg0: i32) -> (i32, i32, i32) {
    %c0_i32 = arith.constant 0 : i32
    %c0_i32_0 = arith.constant 0 : i32
    %c0_i32_1 = arith.constant 0 : i32
    return %arg0, %c0_i32, %c0_i32_0 : i32, i32, i32
  }
  func.func @transform_6(%arg0: i32) -> (i32, i32, i32) {
    %c0_i32 = arith.constant 0 : i32
    %c0_i32_0 = arith.constant 0 : i32
    %c0_i32_1 = arith.constant 0 : i32
    return %arg0, %c0_i32, %c0_i32_0 : i32, i32, i32
  }
}

</mosaic_0001>

<llo_original>
// kernel: model_forward.1
$region0: #{model_forward.1}
  #allocation0 [shape = 'u32[]', space=smem, size = 0x4, offset = 0x4, fixed_abs, tag = 'smem constant byte address 0x4 - core index']
  #allocation1 [shape = 'u32[144,128]{1,0:T(1,128)}', space=vmem, size = 0x12000, scoped, tag = 'internal scratch']
  %s0 = inlined_call_operand.vmem [shape: f32[2,4,256], index: 0, kind: input, shape index: {}]
  %s1 = inlined_call_operand.vmem [shape: f32[32,4], index: 1, kind: input, shape index: {}]
  %s2 = inlined_call_operand.vmem [shape: f32[32,1], index: 2, kind: input, shape index: {}]
  %s3 = inlined_call_operand.vmem [shape: f32[32,10], index: 3, kind: input, shape index: {}]
  %s4 = inlined_call_operand.vmem [shape: f32[1,10], index: 4, kind: input, shape index: {}]
  %s5 = inlined_call_operand.vmem [shape: f32[2,32,256], index: 5, kind: output, shape index: {0}]
  %s6 = inlined_call_operand.hbm [shape: f32[2,1,10], index: 6, kind: output, shape index: {1}]
  %7 = xla_tuple %s5, %s6
  %s8 = sld [smem:[#allocation0]]
  $region61: #{model_forward.1} parent=0
    _
  %s10 = ssub.s32 1, %s8
  %s11 = scalar_select 0, %s10, %s8
  $region1: #{model_forward.1} parent=0
    #allocation2 [shape = 'u8[1024]{0}', space=vmem, size = 0x400, scoped, tag = 'output window, operand 1']
    #allocation3 [shape = 's32[2]{0}', space=sflag, size = 0x8, scoped, tag = 'scoped memory for model_forward.1']
    %12 = vsyncpa [#allocation3], 0
    %s13 = scalar_lea.sflag [#allocation3], 1
    %14 = vsyncpa %s13, 0
    loop: start=0, step=1, limit=4
    $region2: #{model_forward.1} parent=1 // loop_pre_header
      _
    $region3: #{model_forward.1} parent=1 // loop_header
      %s16 = sphi 0, %s20
      %p17 = scmp.ge.s32.totalorder %s16, 4
      %s26 = sphi 0, %s28
      %s29 = sphi 0, %s26
      %s30 = sphi 0, %s29
      %s46 = sphi 0, %s30
      %s50 = sphi 0, %s50
      %s52 = sphi 0, %s50
      %s53 = sphi 0, %s52
      %s67 = sphi 0, %s53
      %s71 = sphi 0, %s71
      %s73 = sphi 0, %s71
      %s74 = sphi 0, %s73
      %s88 = sphi 0, %s74
      %s92 = sphi 0, %s92
      %s94 = sphi 0, %s92
      %s95 = sphi 0, %s94
      %s109 = sphi 0, %s95
      %s113 = sphi 0, %s113
      %s115 = sphi 0, %s113
      %s116 = sphi 0, %s115
      %s130 = sphi 0, %s116
      %s136 = sphi 0, %s138
      %s139 = sphi 0, %s136
      %s140 = sphi 0, %s139
      %s156 = sphi 0, %s140
      %s162 = sphi 0, %s164
      %s165 = sphi 0, %s162
      %s166 = sphi 0, %s165
      %s182 = sphi 0, %s166
    $region4: #{model_forward.1} parent=1 // loop_header_branch
      %19 = sbr.rel (%p17) target = $region8
    $region5: #{model_forward.1} parent=1 // loop_body
      %s21 = ssub.s32 %s16, 1
      %s22 = ssub.s32 %s16, 2
      %s23 = sadd.s32 %s16, 1
      %s24 = ssub.s32 %s16, %s23
      %p25 = scmp.eq.s32.totalorder %s24, 0
      %s27 = sadd.s32 %s26, 1
      %s28 = scalar_select %p25, %s26, %s27
      %p31 = pneg %p25
      %p32 = scmp.eq.s32.totalorder %s16, 1
      %p33 = por %p31, %p32
      %p34 = scmp.ne.s32.totalorder %s26, %s29
      %p35 = scmp.eq.s32.totalorder %s16, 0
      %p36 = por %p34, %p35
      %p37 = scmp.ne.s32.totalorder %s26, %s29
      %p38 = scmp.eq.s32.totalorder %s21, 1
      %p39 = por %p37, %p38
      %p40 = scmp.ne.s32.totalorder %s29, %s30
      %p41 = scmp.eq.s32.totalorder %s21, 0
      %p42 = por %p40, %p41
      %p43 = scmp.ne.s32.totalorder %s29, %s30
      %p44 = scmp.eq.s32.totalorder %s22, 1
      %p45 = por %p43, %p44
      %p47 = scmp.ne.s32.totalorder %s30, %s46
      %p48 = scmp.eq.s32.totalorder %s22, 0
      %p49 = por %p47, %p48
      %s51 = sadd.s32 %s50, 1
      %p54 = scmp.eq.s32.totalorder %s16, 1
      %p55 = scmp.ne.s32.totalorder %s50, %s52
      %p56 = scmp.eq.s32.totalorder %s16, 0
      %p57 = por %p55, %p56
      %p58 = scmp.ne.s32.totalorder %s50, %s52
      %p59 = scmp.eq.s32.totalorder %s21, 1
      %p60 = por %p58, %p59
      %p61 = scmp.ne.s32.totalorder %s52, %s53
      %p62 = scmp.eq.s32.totalorder %s21, 0
      %p63 = por %p61, %p62
      %p64 = scmp.ne.s32.totalorder %s52, %s53
      %p65 = scmp.eq.s32.totalorder %s22, 1
      %p66 = por %p64, %p65
      %p68 = scmp.ne.s32.totalorder %s53, %s67
      %p69 = scmp.eq.s32.totalorder %s22, 0
      %p70 = por %p68, %p69
      %s72 = sadd.s32 %s71, 1
      %p75 = scmp.eq.s32.totalorder %s16, 1
      %p76 = scmp.ne.s32.totalorder %s71, %s73
      %p77 = scmp.eq.s32.totalorder %s16, 0
      %p78 = por %p76, %p77
      %p79 = scmp.ne.s32.totalorder %s71, %s73
      %p80 = scmp.eq.s32.totalorder %s21, 1
      %p81 = por %p79, %p80
      %p82 = scmp.ne.s32.totalorder %s73, %s74
      %p83 = scmp.eq.s32.totalorder %s21, 0
      %p84 = por %p82, %p83
      %p85 = scmp.ne.s32.totalorder %s73, %s74
      %p86 = scmp.eq.s32.totalorder %s22, 1
      %p87 = por %p85, %p86
      %p89 = scmp.ne.s32.totalorder %s74, %s88
      %p90 = scmp.eq.s32.totalorder %s22, 0
      %p91 = por %p89, %p90
      %s93 = sadd.s32 %s92, 1
      %p96 = scmp.eq.s32.totalorder %s16, 1
      %p97 = scmp.ne.s32.totalorder %s92, %s94
      %p98 = scmp.eq.s32.totalorder %s16, 0
      %p99 = por %p97, %p98
      %p100 = scmp.ne.s32.totalorder %s92, %s94
      %p101 = scmp.eq.s32.totalorder %s21, 1
      %p102 = por %p100, %p101
      %p103 = scmp.ne.s32.totalorder %s94, %s95
      %p104 = scmp.eq.s32.totalorder %s21, 0
      %p105 = por %p103, %p104
      %p106 = scmp.ne.s32.totalorder %s94, %s95
      %p107 = scmp.eq.s32.totalorder %s22, 1
      %p108 = por %p106, %p107
      %p110 = scmp.ne.s32.totalorder %s95, %s109
      %p111 = scmp.eq.s32.totalorder %s22, 0
      %p112 = por %p110, %p111
      %s114 = sadd.s32 %s113, 1
      %p117 = scmp.eq.s32.totalorder %s16, 1
      %p118 = scmp.ne.s32.totalorder %s113, %s115
      %p119 = scmp.eq.s32.totalorder %s16, 0
      %p120 = por %p118, %p119
      %p121 = scmp.ne.s32.totalorder %s113, %s115
      %p122 = scmp.eq.s32.totalorder %s21, 1
      %p123 = por %p121, %p122
      %p124 = scmp.ne.s32.totalorder %s115, %s116
      %p125 = scmp.eq.s32.totalorder %s21, 0
      %p126 = por %p124, %p125
      %p127 = scmp.ne.s32.totalorder %s115, %s116
      %p128 = scmp.eq.s32.totalorder %s22, 1
      %p129 = por %p127, %p128
      %p131 = scmp.ne.s32.totalorder %s116, %s130
      %p132 = scmp.eq.s32.totalorder %s22, 0
      %p133 = por %p131, %p132
      %s134 = ssub.s32 %s16, %s23
      %p135 = scmp.eq.s32.totalorder %s134, 0
      %s137 = sadd.s32 %s136, 1
      %s138 = scalar_select %p135, %s136, %s137
      %p141 = pneg %p135
      %p142 = scmp.eq.s32.totalorder %s16, 1
      %p143 = por %p141, %p142
      %p144 = scmp.ne.s32.totalorder %s136, %s139
      %p145 = scmp.eq.s32.totalorder %s16, 0
      %p146 = por %p144, %p145
      %p147 = scmp.ne.s32.totalorder %s136, %s139
      %p148 = scmp.eq.s32.totalorder %s21, 1
      %p149 = por %p147, %p148
      %p150 = scmp.ne.s32.totalorder %s139, %s140
      %p151 = scmp.eq.s32.totalorder %s21, 0
      %p152 = por %p150, %p151
      %p153 = scmp.ne.s32.totalorder %s139, %s140
      %p154 = scmp.eq.s32.totalorder %s22, 1
      %p155 = por %p153, %p154
      %p157 = scmp.ne.s32.totalorder %s140, %s156
      %p158 = scmp.eq.s32.totalorder %s22, 0
      %p159 = por %p157, %p158
      %s160 = ssub.s32 %s16, %s23
      %p161 = scmp.eq.s32.totalorder %s160, 0
      %s163 = sadd.s32 %s162, 1
      %s164 = scalar_select %p161, %s162, %s163
      %p167 = pneg %p161
      %p168 = scmp.eq.s32.totalorder %s16, 1
      %p169 = por %p167, %p168
      %p170 = scmp.ne.s32.totalorder %s162, %s165
      %p171 = scmp.eq.s32.totalorder %s16, 0
      %p172 = por %p170, %p171
      %p173 = scmp.ne.s32.totalorder %s162, %s165
      %p174 = scmp.eq.s32.totalorder %s21, 1
      %p175 = por %p173, %p174
      %p176 = scmp.ne.s32.totalorder %s165, %s166
      %p177 = scmp.eq.s32.totalorder %s21, 0
      %p178 = por %p176, %p177
      %p179 = scmp.ne.s32.totalorder %s165, %s166
      %p180 = scmp.eq.s32.totalorder %s22, 1
      %p181 = por %p179, %p180
      %p183 = scmp.ne.s32.totalorder %s166, %s182
      %p184 = scmp.eq.s32.totalorder %s22, 0
      %p185 = por %p183, %p184
      %p186 = scmp.le.s32.totalorder 1, %s16
      %p187 = scmp.lt.s32.totalorder %s16, 3
      %p188 = pnand %p186, %p187
      %p189 = pneg %p188
      // Predicated region
      $region9: #{model_forward.1} parent=5 // pred_check
        _
      $region10: #{model_forward.1} parent=5 // pred_check_branch
        %191 = sbr.rel (%p188) target = $region12
      $region11: #{model_forward.1} parent=5 // pred_region
        %s192 = ssub.s32 %s16, 1
        // Predicated region
        $region13: #{model_forward.1} parent=11 // pred_check
          %p193 = pneg %p63
        $region14: #{model_forward.1} parent=11 // pred_check_branch
          %195 = sbr.rel (%p193) target = $region16
        $region15: #{model_forward.1} parent=11 // pred_region
          _
        $region16: #{model_forward.1} parent=11 // pred_fallthru
          _
        // Predicated region
        $region17: #{model_forward.1} parent=11 // pred_check
          %p196 = pneg %p84
        $region18: #{model_forward.1} parent=11 // pred_check_branch
          %198 = sbr.rel (%p196) target = $region20
        $region19: #{model_forward.1} parent=11 // pred_region
          _
        $region20: #{model_forward.1} parent=11 // pred_fallthru
          _
        // Predicated region
        $region21: #{model_forward.1} parent=11 // pred_check
          %p199 = pneg %p105
        $region22: #{model_forward.1} parent=11 // pred_check_branch
          %201 = sbr.rel (%p199) target = $region24
        $region23: #{model_forward.1} parent=11 // pred_region
          _
        $region24: #{model_forward.1} parent=11 // pred_fallthru
          _
        // Predicated region
        $region25: #{model_forward.1} parent=11 // pred_check
          %p202 = pneg %p126
        $region26: #{model_forward.1} parent=11 // pred_check_branch
          %204 = sbr.rel (%p202) target = $region28
        $region27: #{model_forward.1} parent=11 // pred_region
          _
        $region28: #{model_forward.1} parent=11 // pred_fallthru
          _
      $region12: #{model_forward.1} parent=5 // pred_fallthru
        _
      %p205 = scmp.lt.s32.totalorder %s16, 2
      // Predicated region
      $region29: #{model_forward.1} parent=5 // pred_check
        %p206 = pneg %p205
      $region30: #{model_forward.1} parent=5 // pred_check_branch
        %208 = sbr.rel (%p206) target = $region32
      $region31: #{model_forward.1} parent=5 // pred_region
        // Predicated region
        $region33: #{model_forward.1} parent=31 // pred_check
          %p209 = pneg %p36
        $region34: #{model_forward.1} parent=31 // pred_check_branch
          %211 = sbr.rel (%p209) target = $region36
        $region35: #{model_forward.1} parent=31 // pred_region
          %p212 = scmp.lt.s32.totalorder %s16, 1
          %s213 = scalar_select %p212, %s16, 1
          %s214 = smul.addr %s213, 2
          %s215 = smul.addr %s214, 4
          %s216 = scalar_lea.vmem %s0, %s215
        $region36: #{model_forward.1} parent=31 // pred_fallthru
          _
      $region32: #{model_forward.1} parent=5 // pred_fallthru
        _
      %p217 = scmp.le.s32.totalorder 1, %s16
      %p218 = scmp.lt.s32.totalorder %s16, 3
      %p219 = pnand %p217, %p218
      %p220 = pneg %p219
      // Predicated region
      $region37: #{model_forward.1} parent=5 // pred_check
        _
      $region38: #{model_forward.1} parent=5 // pred_check_branch
        %222 = sbr.rel (%p219) target = $region40
      $region39: #{model_forward.1} parent=5 // pred_region
        %s223 = ssub.s32 %s16, 1
        %p224 = scmp.lt.s32.totalorder %s21, 1
        %s225 = scalar_select %p224, %s21, 1
        %s226 = smul.addr %s225, 2
        %s227 = smul.addr %s226, 4
        %s228 = scalar_lea.vmem %s0, %s227
        %p229 = pneg %p42
        %p230 = pneg %p39
        %p231 = pneg %p63
        %p232 = pneg %p60
        %p233 = pneg %p84
        %p234 = pneg %p81
        %p235 = pneg %p105
        %p236 = pneg %p102
        %p237 = pneg %p126
        %p238 = pneg %p123
        %p239 = pneg %p152
        %p240 = pneg %p149
        %p241 = scmp.lt.s32.totalorder %s21, 1
        %s242 = scalar_select %p241, %s21, 1
        %s243 = smul.addr %s242, 8
        %s244 = smul.addr %s243, 8
        %s245 = scalar_lea.vmem %s5, %s244
        %p246 = pneg %p178
        %p247 = pneg %p175
        %s248 = sand.u32 %s165, 1
        %s249 = scalar_lea.sflag [#allocation3], %s248
        %s250 = sand.u32 %s165, 1
        %s251 = scalar_lea.vmem [#allocation2], %s250
        %p252 = scmp.lt.s32.totalorder %s21, 1
        %s253 = scalar_select %p252, %s21, 1
        %s254 = smul.addr %s253, 2
        %s255 = smul.addr %s254, 4
        %s256 = scalar_lea.vmem %s0, %s255
        %p257 = scmp.lt.s32.totalorder %s21, 1
        %s258 = scalar_select %p257, %s21, 1
        %s259 = smul.addr %s258, 8
        %s260 = smul.addr %s259, 8
        %s261 = scalar_lea.vmem %s5, %s260
        %v262 = vld [vmem:[%s256] sm:$0xff]
        %v263 = vld [vmem:[%s1] sm:$0xff]
        %v264 = vld [vmem:[%s1 + $0x8] sm:$0xff]
        %v265 = vld [vmem:[%s1 + $0x10] sm:$0xff]
        %v266 = vld [vmem:[%s1 + $0x18] sm:$0xff]
        %v267 = vld [vmem:[%s2] sm:$0xff]
        %v268 = vld [vmem:[%s2 + $0x8] sm:$0xff]
        %v269 = vld [vmem:[%s2 + $0x10] sm:$0xff]
        %v270 = vld [vmem:[%s2 + $0x18] sm:$0xff]
        %272 = vset.pattern.permute.xlu0 0
        %273 = vperm.xlu0 %272, %v267
        %v274 = vpop.permute.xlu0 %273
        %277 = vset.pattern.permute.xlu0 0
        %278 = vperm.xlu0 %277, %v268
        %v279 = vpop.permute.xlu0 %278
        %282 = vset.pattern.permute.xlu0 0
        %283 = vperm.xlu0 %282, %v269
        %v284 = vpop.permute.xlu0 %283
        %287 = vset.pattern.permute.xlu0 0
        %288 = vperm.xlu0 %287, %v270
        %v289 = vpop.permute.xlu0 %288
        %292 = vset.pattern.permute.xlu0 0
        %293 = vperm.xlu0 %292, %v263
        %v294 = vpop.permute.xlu0 %293
        %297 = vset.pattern.permute.xlu0 0
        %298 = vperm.xlu0 %297, %v264
        %v299 = vpop.permute.xlu0 %298
        %302 = vset.pattern.permute.xlu0 0
        %303 = vperm.xlu0 %302, %v265
        %v304 = vpop.permute.xlu0 %303
        %307 = vset.pattern.permute.xlu0 0
        %308 = vperm.xlu0 %307, %v266
        %v309 = vpop.permute.xlu0 %308
        %v312 = vlaneseq
        %v313 = vshrl.u32 %v312, 7
        %v314 = vsub.s32 0, %v313
        %v315 = vrot.slane %v262, %v314
        %v316 = vlaneseq
        %v317 = vshrl.u32 %v316, 7
        %v318 = vsub.s32 4, %v317
        %v319 = vrot.slane %v262, %v318
        %v322 = vlaneseq
        %v323 = vshrl.u32 %v322, 7
        %v324 = vsub.s32 0, %v323
        %v325 = vrot.slane %v315, %v324
        %v326 = vlaneseq
        %v327 = vshrl.u32 %v326, 7
        %v328 = vsub.s32 0, %v327
        %v329 = vrot.slane %v319, %v328
        %v330 = vmul.f32 %v294, %v325
        %v331 = vmul.f32 %v294, %v329
        %v332 = vmul.f32 %v299, %v325
        %v333 = vmul.f32 %v299, %v329
        %v334 = vmul.f32 %v304, %v325
        %v335 = vmul.f32 %v304, %v329
        %v336 = vmul.f32 %v309, %v325
        %v337 = vmul.f32 %v309, %v329
        %v338 = vadd.f32 %v274, %v330
        %v339 = vadd.f32 %v274, %v331
        %v340 = vadd.f32 %v279, %v332
        %v341 = vadd.f32 %v279, %v333
        %v342 = vadd.f32 %v284, %v334
        %v343 = vadd.f32 %v284, %v335
        %v344 = vadd.f32 %v289, %v336
        %v345 = vadd.f32 %v289, %v337
        %346 = vset.pattern.permute.xlu0 1
        %347 = vperm.xlu0 %346, %v263
        %v348 = vpop.permute.xlu0 %347
        %350 = vset.pattern.permute.xlu0 1
        %351 = vperm.xlu0 %350, %v264
        %v352 = vpop.permute.xlu0 %351
        %354 = vset.pattern.permute.xlu0 1
        %355 = vperm.xlu0 %354, %v265
        %v356 = vpop.permute.xlu0 %355
        %358 = vset.pattern.permute.xlu0 1
        %359 = vperm.xlu0 %358, %v266
        %v360 = vpop.permute.xlu0 %359
        %v362 = vlaneseq
        %v363 = vshrl.u32 %v362, 7
        %v364 = vsub.s32 1, %v363
        %v365 = vrot.slane %v262, %v364
        %v366 = vlaneseq
        %v367 = vshrl.u32 %v366, 7
        %v368 = vsub.s32 5, %v367
        %v369 = vrot.slane %v262, %v368
        %v372 = vlaneseq
        %v373 = vshrl.u32 %v372, 7
        %v374 = vsub.s32 1, %v373
        %v375 = vrot.slane %v365, %v374
        %v376 = vlaneseq
        %v377 = vshrl.u32 %v376, 7
        %v378 = vsub.s32 1, %v377
        %v379 = vrot.slane %v369, %v378
        %v380 = vmul.f32 %v348, %v375
        %v381 = vmul.f32 %v348, %v379
        %v382 = vmul.f32 %v352, %v375
        %v383 = vmul.f32 %v352, %v379
        %v384 = vmul.f32 %v356, %v375
        %v385 = vmul.f32 %v356, %v379
        %v386 = vmul.f32 %v360, %v375
        %v387 = vmul.f32 %v360, %v379
        %v388 = vadd.f32 %v338, %v380
        %v389 = vadd.f32 %v339, %v381
        %v390 = vadd.f32 %v340, %v382
        %v391 = vadd.f32 %v341, %v383
        %v392 = vadd.f32 %v342, %v384
        %v393 = vadd.f32 %v343, %v385
        %v394 = vadd.f32 %v344, %v386
        %v395 = vadd.f32 %v345, %v387
        %396 = vset.pattern.permute.xlu0 2
        %397 = vperm.xlu0 %396, %v263
        %v398 = vpop.permute.xlu0 %397
        %400 = vset.pattern.permute.xlu0 2
        %401 = vperm.xlu0 %400, %v264
        %v402 = vpop.permute.xlu0 %401
        %404 = vset.pattern.permute.xlu0 2
        %405 = vperm.xlu0 %404, %v265
        %v406 = vpop.permute.xlu0 %405
        %408 = vset.pattern.permute.xlu0 2
        %409 = vperm.xlu0 %408, %v266
        %v410 = vpop.permute.xlu0 %409
        %v412 = vlaneseq
        %v413 = vshrl.u32 %v412, 7
        %v414 = vsub.s32 2, %v413
        %v415 = vrot.slane %v262, %v414
        %v416 = vlaneseq
        %v417 = vshrl.u32 %v416, 7
        %v418 = vsub.s32 6, %v417
        %v419 = vrot.slane %v262, %v418
        %v422 = vlaneseq
        %v423 = vshrl.u32 %v422, 7
        %v424 = vsub.s32 2, %v423
        %v425 = vrot.slane %v415, %v424
        %v426 = vlaneseq
        %v427 = vshrl.u32 %v426, 7
        %v428 = vsub.s32 2, %v427
        %v429 = vrot.slane %v419, %v428
        %v430 = vmul.f32 %v398, %v425
        %v431 = vmul.f32 %v398, %v429
        %v432 = vmul.f32 %v402, %v425
        %v433 = vmul.f32 %v402, %v429
        %v434 = vmul.f32 %v406, %v425
        %v435 = vmul.f32 %v406, %v429
        %v436 = vmul.f32 %v410, %v425
        %v437 = vmul.f32 %v410, %v429
        %v438 = vadd.f32 %v388, %v430
        %v439 = vadd.f32 %v389, %v431
        %v440 = vadd.f32 %v390, %v432
        %v441 = vadd.f32 %v391, %v433
        %v442 = vadd.f32 %v392, %v434
        %v443 = vadd.f32 %v393, %v435
        %v444 = vadd.f32 %v394, %v436
        %v445 = vadd.f32 %v395, %v437
        %446 = vset.pattern.permute.xlu0 3
        %447 = vperm.xlu0 %446, %v263
        %v448 = vpop.permute.xlu0 %447
        %450 = vset.pattern.permute.xlu0 3
        %451 = vperm.xlu0 %450, %v264
        %v452 = vpop.permute.xlu0 %451
        %454 = vset.pattern.permute.xlu0 3
        %455 = vperm.xlu0 %454, %v265
        %v456 = vpop.permute.xlu0 %455
        %458 = vset.pattern.permute.xlu0 3
        %459 = vperm.xlu0 %458, %v266
        %v460 = vpop.permute.xlu0 %459
        %v462 = vlaneseq
        %v463 = vshrl.u32 %v462, 7
        %v464 = vsub.s32 3, %v463
        %v465 = vrot.slane %v262, %v464
        %v466 = vlaneseq
        %v467 = vshrl.u32 %v466, 7
        %v468 = vsub.s32 7, %v467
        %v469 = vrot.slane %v262, %v468
        %v472 = vlaneseq
        %v473 = vshrl.u32 %v472, 7
        %v474 = vsub.s32 3, %v473
        %v475 = vrot.slane %v465, %v474
        %v476 = vlaneseq
        %v477 = vshrl.u32 %v476, 7
        %v478 = vsub.s32 3, %v477
        %v479 = vrot.slane %v469, %v478
        %v480 = vmul.f32 %v448, %v475
        %v481 = vmul.f32 %v448, %v479
        %v482 = vmul.f32 %v452, %v475
        %v483 = vmul.f32 %v452, %v479
        %v484 = vmul.f32 %v456, %v475
        %v485 = vmul.f32 %v456, %v479
        %v486 = vmul.f32 %v460, %v475
        %v487 = vmul.f32 %v460, %v479
        %v488 = vadd.f32 %v438, %v480
        %v489 = vadd.f32 %v439, %v481
        %v490 = vadd.f32 %v440, %v482
        %v491 = vadd.f32 %v441, %v483
        %v492 = vadd.f32 %v442, %v484
        %v493 = vadd.f32 %v443, %v485
        %v494 = vadd.f32 %v444, %v486
        %v495 = vadd.f32 %v445, %v487
        %v496 = vmax.f32 %v488, 0.0
        %v497 = vmax.f32 %v489, 0.0
        %v498 = vmax.f32 %v490, 0.0
        %v499 = vmax.f32 %v491, 0.0
        %v500 = vmax.f32 %v492, 0.0
        %v501 = vmax.f32 %v493, 0.0
        %v502 = vmax.f32 %v494, 0.0
        %v503 = vmax.f32 %v495, 0.0
        %504 = vst [vmem:[%s261] sm:$0xff] %v496
        %505 = vst [vmem:[%s261 + $0x8] sm:$0xff] %v497
        %506 = vst [vmem:[%s261 + $0x10] sm:$0xff] %v498
        %507 = vst [vmem:[%s261 + $0x18] sm:$0xff] %v499
        %508 = vst [vmem:[%s261 + $0x20] sm:$0xff] %v500
        %509 = vst [vmem:[%s261 + $0x28] sm:$0xff] %v501
        %510 = vst [vmem:[%s261 + $0x30] sm:$0xff] %v502
        %511 = vst [vmem:[%s261 + $0x38] sm:$0xff] %v503
        %v512 = vadd.f32 %v496, %v497
        %513 = vadd.xlane.f32.xlu0 %v512
        %v514 = vpop.xlane.xlu0 %513
        %v515 = vadd.f32 %v498, %v499
        %516 = vadd.xlane.f32.xlu0 %v515
        %v517 = vpop.xlane.xlu0 %516
        %v518 = vadd.f32 %v500, %v501
        %519 = vadd.xlane.f32.xlu0 %v518
        %v520 = vpop.xlane.xlu0 %519
        %v521 = vadd.f32 %v502, %v503
        %522 = vadd.xlane.f32.xlu0 %v521
        %v523 = vpop.xlane.xlu0 %522
        %v524 = vmul.f32 %v514, 0.00390625
        %v525 = vmul.f32 %v517, 0.00390625
        %v526 = vmul.f32 %v520, 0.00390625
        %v527 = vmul.f32 %v523, 0.00390625
        %v528 = vld [vmem:[%s3] sm:$0xff]
        %v529 = vld [vmem:[%s3 + $0x8] sm:$0xff]
        %v530 = vld [vmem:[%s3 + $0x10] sm:$0xff]
        %v531 = vld [vmem:[%s3 + $0x18] sm:$0xff]
        %v532 = vmul.f32 %v528, %v524
        %v533 = vmul.f32 %v529, %v525
        %v534 = vmul.f32 %v530, %v526
        %v535 = vmul.f32 %v531, %v527
        %vm536 = vcmask 80896
        %v537 = vsel %vm536, %v532, 0.0
        %v538 = vsel %vm536, %v533, 0.0
        %v539 = vadd.f32 %v537, %v538
        %v540 = vsel %vm536, %v534, 0.0
        %v541 = vadd.f32 %v539, %v540
        %v542 = vsel %vm536, %v535, 0.0
        %v543 = vadd.f32 %v541, %v542
        %v544 = vrot.slane %v543, 4
        %v545 = vadd.f32 %v543, %v544
        %v546 = vrot.slane %v545, 2
        %v547 = vadd.f32 %v545, %v546
        %v548 = vrot.slane %v547, 1
        %v549 = vadd.f32 %v547, %v548
        %v550 = vld [vmem:[%s4] sm:$0x1]
        %v551 = vadd.f32 %v549, %v550
        %vm552 = vcmask 73728
        %553 = vst.msk [vmem:[%s251] sm:$0x1] %vm552, %v551
        %p554 = scmp.lt.s32.totalorder %s21, 1
        %s555 = scalar_select %p554, %s21, 1
        %s556 = smul.addr %s555, 8
        %s557 = smul.addr %s556, 8
        %s558 = scalar_lea.vmem %s5, %s557
        %s559 = sand.u32 %s165, 1
        %s560 = scalar_lea.sflag [#allocation3], %s559
        %s561 = sand.u32 %s165, 1
        %s562 = scalar_lea.vmem [#allocation2], %s561
        // Predicated region
        $region41: #{model_forward.1} parent=39 // pred_check
          %p563 = pneg %p149
        $region42: #{model_forward.1} parent=39 // pred_check_branch
          %565 = sbr.rel (%p563) target = $region44
        $region43: #{model_forward.1} parent=39 // pred_region
          _
        $region44: #{model_forward.1} parent=39 // pred_fallthru
          _
        // Predicated region
        $region45: #{model_forward.1} parent=39 // pred_check
          %p566 = pneg %p175
        $region46: #{model_forward.1} parent=39 // pred_check_branch
          %568 = sbr.rel (%p566) target = $region48
        $region47: #{model_forward.1} parent=39 // pred_region
          %s570 = ssub.s32 16, 16
          %571 = vsyncadd %s560, %s570
          %s572 = smul.addr %s21, 16
          %s573 = scalar_lea.hbm %s6, %s572
          %s575 = sshll.u32 %s562, 4
          %s576 = int_to_ptr.vmem [resolvable:$true] %s575
          %578 = dma.vmem_to_hbm [thread:$0]  %s576, 16, %s573, %s560
        $region48: #{model_forward.1} parent=39 // pred_fallthru
          _
      $region40: #{model_forward.1} parent=5 // pred_fallthru
        _
      %p579 = scmp.le.s32.totalorder 2, %s16
      // Predicated region
      $region49: #{model_forward.1} parent=5 // pred_check
        %p580 = pneg %p579
      $region50: #{model_forward.1} parent=5 // pred_check_branch
        %582 = sbr.rel (%p580) target = $region52
      $region51: #{model_forward.1} parent=5 // pred_region
        %s583 = ssub.s32 %s16, 2
        // Predicated region
        $region53: #{model_forward.1} parent=51 // pred_check
          %p584 = pneg %p155
        $region54: #{model_forward.1} parent=51 // pred_check_branch
          %586 = sbr.rel (%p584) target = $region56
        $region55: #{model_forward.1} parent=51 // pred_region
          %p587 = scmp.lt.s32.totalorder %s22, 1
          %s588 = scalar_select %p587, %s22, 1
          %s589 = smul.addr %s588, 8
          %s590 = smul.addr %s589, 8
          %s591 = scalar_lea.vmem %s5, %s590
        $region56: #{model_forward.1} parent=51 // pred_fallthru
          _
        // Predicated region
        $region57: #{model_forward.1} parent=51 // pred_check
          %p592 = pneg %p181
        $region58: #{model_forward.1} parent=51 // pred_check_branch
          %594 = sbr.rel (%p592) target = $region60
        $region59: #{model_forward.1} parent=51 // pred_region
          %s595 = sand.u32 %s166, 1
          %s596 = scalar_lea.sflag [#allocation3], %s595
          %s597 = sand.u32 %s166, 1
          %s598 = scalar_lea.vmem [#allocation2], %s597
          %599 = dma.done %s596, 16
        $region60: #{model_forward.1} parent=51 // pred_fallthru
          _
      $region52: #{model_forward.1} parent=5 // pred_fallthru
        _
    $region6: #{model_forward.1} parent=1 // loop_footer
      %s20 = sadd.s32 1, %s16
    $region7: #{model_forward.1} parent=1 // loop_footer_branch
      %15 = sbr.rel target = $region3
    $region8: #{model_forward.1} parent=1 // loop_exit
      _
    %600 = vsyncpa [#allocation3], 1
    %s601 = scalar_lea.sflag [#allocation3], 1
    %602 = vsyncpa %s601, 1

</llo_original>
